<compile_context>
chip_gen: v7x
topology: tpu7x:2x2x1
jax: 0.10.0
libtpu: 0.0.40
codegen_flags: <defaults>
</compile_context>

<pallas_src>
import jax
import jax.numpy as jnp
from jax.experimental import pallas as pl
from jax.experimental.pallas import tpu as pltpu


def _round_up(x, m):
    return (x + m - 1) // m * m


def _make_attention_kernel(t_real):
    def kernel(q_ref, x_ref, pm_ref, mem_ref, wq_ref, wloc_ref, v_ref,
               ctx_ref, att_ref):
        # q_ref:    (BT, R)       attention hidden state tile (f32)
        # x_ref:    (BT, Tp, 2K)  im2col'd attention_weights_cat (bf16 stream)
        # pm_ref:   (BT, Tp, D)   processed memory (bf16 stream)
        # mem_ref:  (BT, Tp, E)   encoder memory (bf16 stream)
        # wq_ref:   (R, D)        query weight (transposed, f32)
        # wloc_ref: (2K, D)       fused location conv + projection weight (f32)
        # v_ref:    (1, D)        energy vector v (f32)
        # ctx_ref:  (BT, E)       attention context output (dense 2-D slab)
        # att_ref:  (BT, Tp)      attention weights output (lane-dense)
        BT, Tp, D = pm_ref.shape
        C = x_ref.shape[2]

        # processed query: (BT, R) @ (R, D) -> (BT, D)
        pq = jnp.dot(q_ref[...], wq_ref[...],
                     preferred_element_type=jnp.float32)

        # Fused location conv + projection: one (BT*Tp, 2K) @ (2K, D) matmul.
        # Tp is a multiple of 8, so collapsing (BT, Tp) is tile-aligned and
        # layout-preserving (no relayout copy).
        x_f32 = x_ref[...].astype(jnp.float32)
        locp = jnp.dot(x_f32.reshape(BT * Tp, C), wloc_ref[...],
                       preferred_element_type=jnp.float32).reshape(BT, Tp, D)

        # energies = v . tanh(pq + loc + pm)   (all f32 on the VPU/EUP)
        pm_f32 = pm_ref[...].astype(jnp.float32)
        e = jnp.tanh(pq[:, None, :] + locp + pm_f32)           # (BT, Tp, D)
        energies = jnp.sum(e * v_ref[...], axis=-1)            # (BT, Tp)

        if Tp != t_real:
            # Mask padded time columns so they vanish under the softmax.
            t_ids = jax.lax.broadcasted_iota(jnp.int32, (BT, Tp), 1)
            energies = jnp.where(t_ids < t_real, energies, -1e30)

        # softmax over time (last axis, lane-dense); exact normalization.
        m = jnp.max(energies, axis=-1, keepdims=True)
        p = jnp.exp(energies - m)
        s = jnp.sum(p, axis=-1, keepdims=True)
        w = p / s                                              # (BT, Tp)
        att_ref[...] = w

        # context: batched (1, Tp) @ (Tp, E) on the MXU, stored as a dense
        # (BT, E) slab (unmasked stores).
        mem_f32 = mem_ref[...].astype(jnp.float32)
        ctx3 = jnp.einsum('bqt,bte->bqe', w[:, None, :], mem_f32,
                          preferred_element_type=jnp.float32)  # (BT, 1, E)
        ctx_ref[...] = ctx3[:, 0, :]

    return kernel


def _vmem_limit_bytes(b_tile, Tp, R, C, D, E, stream_bytes):
    # Rough per-block footprint: double-buffered input/output blocks plus the
    # in-kernel f32 temporaries (x/pm/mem casts, locp, e).
    streams = b_tile * Tp * (C + D + E) * stream_bytes
    small = b_tile * R * 4 + (R * D + C * D + D) * 4
    outs = b_tile * (E + Tp) * 4
    temps = b_tile * Tp * (C + 3 * D + 2 * E + 8) * 4
    est = 2 * (streams + small + outs) + temps
    return int(min(96 * 2**20, max(32 * 2**20, 1.5 * est)))


def attention_forward(hidden, memory, processed_memory, attention_weights_cat,
                      mask, params, b_tile=None, stream_dtype=jnp.bfloat16):
    del mask  # never applied in the reference forward()
    wq_t, wconv_kcf, wp_t, v_row = params
    B, T, E = memory.shape
    R = hidden.shape[1]
    D = wq_t.shape[1]
    K, C_in, _ = wconv_kcf.shape
    P = (K - 1) // 2
    C = K * C_in

    # Fuse conv + projection: W_loc[(k,c), d] = sum_f wconv[k,c,f] * wp[f,d]
    w_loc = jnp.einsum('kcf,fd->kcd', wconv_kcf, wp_t).reshape(C, D)

    # im2col the padded conv input, time-major: X[b,t,k*2+c] = x_pad[b,c,t+k]
    x_pad = jnp.pad(attention_weights_cat, ((0, 0), (0, 0), (P, P)))
    cols = jnp.stack([x_pad[:, :, k:k + T] for k in range(K)], axis=1)  # (B,K,2,T)
    x_col = jnp.transpose(cols, (0, 3, 1, 2)).reshape(B, T, C)          # (B,T,2K)

    # Pad T: multiple of 8 for sublane tiles; up to 128 when small so the
    # attention-weight output store is lane-dense (unmasked vst).
    Tp = _round_up(T, 128) if T < 128 else _round_up(T, 8)

    # Batch tile: block sublane dims must be a multiple of 8 or equal the full
    # (padded) batch. When tiling, pad so there are >= 2 grid steps (both v7x
    # TensorCores busy, first-block DMA overlapped).
    if b_tile is None:
        b_tile = B if B <= 4 else 8
    if b_tile >= B and b_tile % 8 != 0:
        b_tile = B
    Bp = B if b_tile == B else _round_up(max(B, 2 * b_tile), b_tile)

    def pad_bt(a, tdim=None):
        pads = [(0, Bp - B)] + [(0, 0)] * (a.ndim - 1)
        if tdim is not None:
            pads[tdim] = (0, Tp - T)
        return jnp.pad(a, pads)

    hidden_p = pad_bt(hidden)
    x_col_p = pad_bt(x_col, tdim=1).astype(stream_dtype)
    pm_p = pad_bt(processed_memory, tdim=1).astype(stream_dtype)
    mem_p = pad_bt(memory, tdim=1).astype(stream_dtype)

    stream_bytes = jnp.dtype(stream_dtype).itemsize
    vmem_limit = _vmem_limit_bytes(b_tile, Tp, R, C, D, E, stream_bytes)

    kernel = _make_attention_kernel(T)
    ctx, att = pl.pallas_call(
        kernel,
        out_shape=(jax.ShapeDtypeStruct((Bp, E), jnp.float32),
                   jax.ShapeDtypeStruct((Bp, Tp), jnp.float32)),
        grid_spec=pltpu.PrefetchScalarGridSpec(
            num_scalar_prefetch=0,
            grid=(Bp // b_tile,),
            in_specs=[
                pl.BlockSpec((b_tile, R), lambda b: (b, 0)),
                pl.BlockSpec((b_tile, Tp, C), lambda b: (b, 0, 0)),
                pl.BlockSpec((b_tile, Tp, D), lambda b: (b, 0, 0)),
                pl.BlockSpec((b_tile, Tp, E), lambda b: (b, 0, 0)),
                pl.BlockSpec((R, D), lambda b: (0, 0)),
                pl.BlockSpec((C, D), lambda b: (0, 0)),
                pl.BlockSpec((1, D), lambda b: (0, 0)),
            ],
            out_specs=[
                pl.BlockSpec((b_tile, E), lambda b: (b, 0)),
                pl.BlockSpec((b_tile, Tp), lambda b: (b, 0)),
            ]),
        compiler_params=pltpu.CompilerParams(
            dimension_semantics=("parallel",),
            vmem_limit_bytes=vmem_limit),
    )(hidden_p, x_col_p, pm_p, mem_p, wq_t, w_loc, v_row)

    return ctx[:B, :], att[:B, :T]


def _reference_forward(hidden, memory, processed_memory, awc, params):
    """Pure-JAX reference matching the PyTorch module's forward()."""
    wq_t, wconv_kcf, wp_t, v_row = params
    K = wconv_kcf.shape[0]
    P = (K - 1) // 2
    pq = hidden @ wq_t                                        # (B, D)
    w_conv_oik = jnp.transpose(wconv_kcf, (2, 1, 0))          # (F, 2, K)
    conv = jax.lax.conv_general_dilated(
        awc, w_conv_oik, window_strides=(1,), padding=[(P, P)],
        dimension_numbers=("NCH", "OIH", "NCH"))              # (B, F, T)
    locp = jnp.transpose(conv, (0, 2, 1)) @ wp_t              # (B, T, D)
    energies = jnp.sum(
        jnp.tanh(pq[:, None, :] + locp + processed_memory) * v_row[0], axis=-1)
    att = jax.nn.softmax(energies, axis=1)                    # (B, T)
    ctx = jnp.einsum("bt,bte->be", att, memory)               # (B, E)
    return ctx, att


if __name__ == "__main__":
    key = jax.random.PRNGKey(0)
    B, T = 2, 16
    attention_rnn_dim = 32
    embedding_dim = 48
    attention_dim = 32
    attention_location_n_filters = 8
    attention_location_kernel_size = 5

    ks = jax.random.split(key, 8)
    hidden = jax.random.normal(ks[0], (B, attention_rnn_dim), jnp.float32)
    memory = jax.random.normal(ks[1], (B, T, embedding_dim), jnp.float32)
    processed_memory = jax.random.normal(ks[2], (B, T, attention_dim),
                                         jnp.float32)
    attention_weights_cat = jax.nn.softmax(
        jax.random.normal(ks[3], (B, 2, T), jnp.float32), axis=-1)
    mask = jnp.zeros((B, T), dtype=bool)

    # Deterministic synthetic parameters (linears stored transposed: (in,out)).
    wq_t = 0.1 * jax.random.normal(ks[4], (attention_rnn_dim, attention_dim),
                                   jnp.float32)
    wconv_kcf = 0.1 * jax.random.normal(
        ks[5], (attention_location_kernel_size, 2,
                attention_location_n_filters), jnp.float32)
    wp_t = 0.1 * jax.random.normal(
        ks[6], (attention_location_n_filters, attention_dim), jnp.float32)
    v_row = 0.1 * jax.random.normal(ks[7], (1, attention_dim), jnp.float32)
    params = (wq_t, wconv_kcf, wp_t, v_row)

    ctx, att = attention_forward(hidden, memory, processed_memory,
                                 attention_weights_cat, mask, params)
    jax.block_until_ready((ctx, att))

    # Tight check: reference fed the same bf16-rounded streams the kernel
    # consumes (everything else in the kernel is f32 math).
    q = lambda a: a.astype(jnp.bfloat16).astype(jnp.float32)
    ctx_q, att_q = _reference_forward(hidden, q(memory), q(processed_memory),
                                      q(attention_weights_cat), params)
    assert jnp.allclose(att, att_q, atol=1e-4, rtol=1e-3)
    assert jnp.allclose(ctx, ctx_q, atol=1e-4, rtol=1e-3)

    # Loose check: end-to-end deviation vs. the full-f32 reference is bounded
    # by the bf16 rounding of the streamed operands.
    ctx_f, att_f = _reference_forward(hidden, memory, processed_memory,
                                      attention_weights_cat, params)
    assert jnp.allclose(att, att_f, atol=5e-2, rtol=5e-2)
    assert jnp.allclose(ctx, ctx_f, atol=5e-2, rtol=5e-2)

    print("KERNEL_OK")
</pallas_src>

<mosaic_0001>
module attributes {stable_mosaic.version = 11 : i64} {
  func.func @kernel(%arg0: i32, %arg1: memref<2x32xf32, #tpu.memory_space<vmem>>, %arg2: memref<2x128x10xbf16, #tpu.memory_space<vmem>>, %arg3: memref<2x128x32xbf16, #tpu.memory_space<vmem>>, %arg4: memref<2x128x48xbf16, #tpu.memory_space<vmem>>, %arg5: memref<32x32xf32, #tpu.memory_space<vmem>>, %arg6: memref<10x32xf32, #tpu.memory_space<vmem>>, %arg7: memref<1x32xf32, #tpu.memory_space<vmem>>, %arg8: memref<2x48xf32, #tpu.memory_space<vmem>>, %arg9: memref<2x128xf32, #tpu.memory_space<vmem>>) attributes {dimension_semantics = [#tpu.dimension_semantics<parallel>], iteration_bounds = array<i64: 1>, scalar_prefetch = 0 : i64, scratch_operands = 0 : i64, tpu.core_type = #tpu.core_type<tc>, window_params = [{transform_indices = @transform_0, window_bounds = array<i64: 2, 32>}, {transform_indices = @transform_1, window_bounds = array<i64: 2, 128, 10>}, {transform_indices = @transform_2, window_bounds = array<i64: 2, 128, 32>}, {transform_indices = @transform_3, window_bounds = array<i64: 2, 128, 48>}, {pipeline_mode = #tpu.pipeline_mode<synchronous>, transform_indices = @transform_4, window_bounds = array<i64: 32, 32>}, {pipeline_mode = #tpu.pipeline_mode<synchronous>, transform_indices = @transform_5, window_bounds = array<i64: 10, 32>}, {pipeline_mode = #tpu.pipeline_mode<synchronous>, transform_indices = @transform_6, window_bounds = array<i64: 1, 32>}, {transform_indices = @transform_7, window_bounds = array<i64: 2, 48>}, {transform_indices = @transform_8, window_bounds = array<i64: 2, 128>}]} {
    %c0 = arith.constant 0 : index
    %c0_0 = arith.constant 0 : index
    %0 = vector.load %arg1[%c0, %c0_0] : memref<2x32xf32, #tpu.memory_space<vmem>>, vector<2x32xf32>
    %c0_1 = arith.constant 0 : index
    %c0_2 = arith.constant 0 : index
    %1 = vector.load %arg5[%c0_1, %c0_2] : memref<32x32xf32, #tpu.memory_space<vmem>>, vector<32x32xf32>
    %cst = arith.constant dense<0.000000e+00> : vector<2x32xf32>
    %2 = tpu.matmul %0, %1, %cst {dimension_numbers = #tpu.dot_dimension_numbers<[1], [0], [0], [1], [0, 0, 1, 1], [], []>} : vector<2x32xf32>, vector<32x32xf32>, vector<2x32xf32> -> vector<2x32xf32>
    %c0_3 = arith.constant 0 : index
    %c0_4 = arith.constant 0 : index
    %c0_5 = arith.constant 0 : index
    %3 = vector.load %arg2[%c0_3, %c0_4, %c0_5] : memref<2x128x10xbf16, #tpu.memory_space<vmem>>, vector<2x128x10xbf16>
    %4 = arith.extf %3 : vector<2x128x10xbf16> to vector<2x128x10xf32>
    %5 = vector.shape_cast %4 : vector<2x128x10xf32> to vector<256x10xf32>
    %c0_6 = arith.constant 0 : index
    %c0_7 = arith.constant 0 : index
    %6 = vector.load %arg6[%c0_6, %c0_7] : memref<10x32xf32, #tpu.memory_space<vmem>>, vector<10x32xf32>
    %cst_8 = arith.constant dense<0.000000e+00> : vector<256x32xf32>
    %7 = tpu.matmul %5, %6, %cst_8 {dimension_numbers = #tpu.dot_dimension_numbers<[1], [0], [0], [1], [0, 0, 1, 1], [], []>} : vector<256x10xf32>, vector<10x32xf32>, vector<256x32xf32> -> vector<256x32xf32>
    %8 = vector.shape_cast %7 : vector<256x32xf32> to vector<2x128x32xf32>
    %c0_9 = arith.constant 0 : index
    %c0_10 = arith.constant 0 : index
    %c0_11 = arith.constant 0 : index
    %9 = vector.load %arg3[%c0_9, %c0_10, %c0_11] : memref<2x128x32xbf16, #tpu.memory_space<vmem>>, vector<2x128x32xbf16>
    %10 = arith.extf %9 : vector<2x128x32xbf16> to vector<2x128x32xf32>
    %11 = vector.shape_cast %2 : vector<2x32xf32> to vector<2x1x32xf32>
    %12 = vector.broadcast %11 : vector<2x1x32xf32> to vector<2x128x32xf32>
    %13 = arith.addf %12, %8 : vector<2x128x32xf32>
    %14 = arith.addf %13, %10 : vector<2x128x32xf32>
    %15 = math.tanh %14 : vector<2x128x32xf32>
    %c0_12 = arith.constant 0 : index
    %c0_13 = arith.constant 0 : index
    %16 = vector.load %arg7[%c0_12, %c0_13] : memref<1x32xf32, #tpu.memory_space<vmem>>, vector<1x32xf32>
    %17 = vector.shape_cast %16 : vector<1x32xf32> to vector<1x1x32xf32>
    %18 = vector.broadcast %17 : vector<1x1x32xf32> to vector<2x128x32xf32>
    %19 = arith.mulf %15, %18 : vector<2x128x32xf32>
    %cst_14 = arith.constant dense<0.000000e+00> : vector<2x128xf32>
    %20 = vector.multi_reduction <add>, %19, %cst_14 [2] : vector<2x128x32xf32> to vector<2x128xf32>
    %21 = tpu.iota {dimensions = array<i32: 1>} : vector<2x128xi32>
    %c16_i32 = arith.constant 16 : i32
    %22 = vector.broadcast %c16_i32 : i32 to vector<2x128xi32>
    %23 = arith.cmpi slt, %21, %22 : vector<2x128xi32>
    %cst_15 = arith.constant -1.000000e+30 : f32
    %24 = vector.broadcast %cst_15 : f32 to vector<2x128xf32>
    %25 = arith.select %23, %20, %24 : vector<2x128xi1>, vector<2x128xf32>
    %cst_16 = arith.constant dense<0xFF800000> : vector<2xf32>
    %26 = vector.multi_reduction <maximumf>, %25, %cst_16 [1] : vector<2x128xf32> to vector<2xf32>
    %27 = vector.shape_cast %26 : vector<2xf32> to vector<2x1xf32>
    %28 = vector.broadcast %27 : vector<2x1xf32> to vector<2x128xf32>
    %29 = arith.subf %25, %28 : vector<2x128xf32>
    %30 = math.exp %29 : vector<2x128xf32>
    %cst_17 = arith.constant dense<0.000000e+00> : vector<2xf32>
    %31 = vector.multi_reduction <add>, %30, %cst_17 [1] : vector<2x128xf32> to vector<2xf32>
    %32 = vector.shape_cast %31 : vector<2xf32> to vector<2x1xf32>
    %33 = vector.broadcast %32 : vector<2x1xf32> to vector<2x128xf32>
    %34 = arith.divf %30, %33 : vector<2x128xf32>
    %c0_18 = arith.constant 0 : index
    %c0_19 = arith.constant 0 : index
    %35 = vector.load %arg9[%c0_18, %c0_19] : memref<2x128xf32, #tpu.memory_space<vmem>>, vector<2x128xf32>
    tpu.vector_store %arg9[%c0_18, %c0_19], %34 {strides = array<i32>} : memref<2x128xf32, #tpu.memory_space<vmem>>, vector<2x128xf32>,
    %c0_20 = arith.constant 0 : index
    %c0_21 = arith.constant 0 : index
    %c0_22 = arith.constant 0 : index
    %36 = vector.load %arg4[%c0_20, %c0_21, %c0_22] : memref<2x128x48xbf16, #tpu.memory_space<vmem>>, vector<2x128x48xbf16>
    %37 = arith.extf %36 : vector<2x128x48xbf16> to vector<2x128x48xf32>
    %38 = vector.shape_cast %34 : vector<2x128xf32> to vector<2x1x128xf32>
    "tpu.trace_start"() <{level = 10 : i32, message = "bqt,bte->bqe"}> : () -> ()
    %cst_23 = arith.constant dense<0.000000e+00> : vector<2x1x48xf32>
    %39 = tpu.matmul %38, %37, %cst_23 {dimension_numbers = #tpu.dot_dimension_numbers<[2], [1], [1], [2], [0, 0, 0, 1, 1, 2], [0], [0]>} : vector<2x1x128xf32>, vector<2x128x48xf32>, vector<2x1x48xf32> -> vector<2x1x48xf32>
    "tpu.trace_stop"() : () -> ()
    %40 = vector.shape_cast %39 : vector<2x1x48xf32> to vector<2x48xf32>
    %c0_24 = arith.constant 0 : index
    %c0_25 = arith.constant 0 : index
    %41 = vector.load %arg8[%c0_24, %c0_25] : memref<2x48xf32, #tpu.memory_space<vmem>>, vector<2x48xf32>
    tpu.vector_store %arg8[%c0_24, %c0_25], %40 {strides = array<i32>} : memref<2x48xf32, #tpu.memory_space<vmem>>, vector<2x48xf32>,
    return
  }
  func.func @transform_0(%arg0: i32) -> (i32, i32) {
    %c0_i32 = arith.constant 0 : i32
    %c0_i32_0 = arith.constant 0 : i32
    return %arg0, %c0_i32 : i32, i32
  }
  func.func @transform_1(%arg0: i32) -> (i32, i32, i32) {
    %c0_i32 = arith.constant 0 : i32
    %c0_i32_0 = arith.constant 0 : i32
    %c0_i32_1 = arith.constant 0 : i32
    return %arg0, %c0_i32, %c0_i32_0 : i32, i32, i32
  }
  func.func @transform_2(%arg0: i32) -> (i32, i32, i32) {
    %c0_i32 = arith.constant 0 : i32
    %c0_i32_0 = arith.constant 0 : i32
    %c0_i32_1 = arith.constant 0 : i32
    return %arg0, %c0_i32, %c0_i32_0 : i32, i32, i32
  }
  func.func @transform_3(%arg0: i32) -> (i32, i32, i32) {
    %c0_i32 = arith.constant 0 : i32
    %c0_i32_0 = arith.constant 0 : i32
    %c0_i32_1 = arith.constant 0 : i32
    return %arg0, %c0_i32, %c0_i32_0 : i32, i32, i32
  }
  func.func @transform_4(%arg0: i32) -> (i32, i32) {
    %c0_i32 = arith.constant 0 : i32
    %c0_i32_0 = arith.constant 0 : i32
    %c0_i32_1 = arith.constant 0 : i32
    return %c0_i32, %c0_i32_0 : i32, i32
  }
  func.func @transform_5(%arg0: i32) -> (i32, i32) {
    %c0_i32 = arith.constant 0 : i32
    %c0_i32_0 = arith.constant 0 : i32
    %c0_i32_1 = arith.constant 0 : i32
    return %c0_i32, %c0_i32_0 : i32, i32
  }
  func.func @transform_6(%arg0: i32) -> (i32, i32) {
    %c0_i32 = arith.constant 0 : i32
    %c0_i32_0 = arith.constant 0 : i32
    %c0_i32_1 = arith.constant 0 : i32
    return %c0_i32, %c0_i32_0 : i32, i32
  }
  func.func @transform_7(%arg0: i32) -> (i32, i32) {
    %c0_i32 = arith.constant 0 : i32
    %c0_i32_0 = arith.constant 0 : i32
    return %arg0, %c0_i32 : i32, i32
  }
  func.func @transform_8(%arg0: i32) -> (i32, i32) {
    %c0_i32 = arith.constant 0 : i32
    %c0_i32_0 = arith.constant 0 : i32
    return %arg0, %c0_i32 : i32, i32
  }
}

</mosaic_0001>

<llo_original>
// kernel: tpu_custom_call.1
$region0: #{tpu_custom_call.1}
  #allocation0 [shape = 'u32[]', space=smem, size = 0x4, offset = 0x4, fixed_abs, tag = 'smem constant byte address 0x4 - core index']
  #allocation1 [shape = 'u32[144,128]{1,0:T(1,128)}', space=vmem, size = 0x12000, scoped, tag = 'internal scratch']
  %s0 = inlined_call_operand.vmem [shape: f32[2,32], index: 0, kind: input, shape index: {}]
  %s1 = inlined_call_operand.vmem [shape: bf16[2,128,10], index: 1, kind: input, shape index: {}]
  %s2 = inlined_call_operand.vmem [shape: bf16[2,128,32], index: 2, kind: input, shape index: {}]
  %s3 = inlined_call_operand.vmem [shape: bf16[2,128,48], index: 3, kind: input, shape index: {}]
  %s4 = inlined_call_operand.vmem [shape: f32[32,32], index: 4, kind: input, shape index: {}]
  %s5 = inlined_call_operand.vmem [shape: f32[10,32], index: 5, kind: input, shape index: {}]
  %s6 = inlined_call_operand.vmem [shape: f32[1,32], index: 6, kind: input, shape index: {}]
  %s7 = inlined_call_operand.hbm [shape: f32[2,48], index: 7, kind: output, shape index: {0}]
  %s8 = inlined_call_operand.hbm [shape: f32[2,128], index: 8, kind: output, shape index: {1}]
  %9 = xla_tuple %s7, %s8
  %s10 = sld [smem:[#allocation0]]
  $region46: #{tpu_custom_call.1} parent=0
    _
  %s12 = ssub.s32 1, %s10
  %s13 = scalar_select 0, %s12, %s10
  $region1: #{tpu_custom_call.1} parent=0
    #allocation2 [shape = 'u8[1024]{0}', space=vmem, size = 0x400, scoped, tag = 'output window, operand 0, single buffered']
    #allocation3 [shape = 's32[1]{0}', space=sflag, size = 0x4, scoped, tag = 'scoped memory for tpu_custom_call.1']
    #allocation4 [shape = 'u8[1024]{0}', space=vmem, size = 0x400, scoped, tag = 'output window, operand 1, single buffered']
    #allocation5 [shape = 's32[1]{0}', space=sflag, size = 0x4, scoped, tag = 'scoped memory for tpu_custom_call.1']
    %14 = vsyncpa [#allocation3], 0
    %15 = vsyncpa [#allocation5], 0
    // Predicated region
    $region2: #{tpu_custom_call.1} parent=1 // pred_check
      _
    $region3: #{tpu_custom_call.1} parent=1 // pred_check_branch
      %17 = sbr.rel (0) target = $region5
    $region4: #{tpu_custom_call.1} parent=1 // pred_region
      _
    $region5: #{tpu_custom_call.1} parent=1 // pred_fallthru
      _
    // Predicated region
    $region6: #{tpu_custom_call.1} parent=1 // pred_check
      _
    $region7: #{tpu_custom_call.1} parent=1 // pred_check_branch
      %19 = sbr.rel (0) target = $region9
    $region8: #{tpu_custom_call.1} parent=1 // pred_region
      _
    $region9: #{tpu_custom_call.1} parent=1 // pred_fallthru
      _
    // Predicated region
    $region10: #{tpu_custom_call.1} parent=1 // pred_check
      _
    $region11: #{tpu_custom_call.1} parent=1 // pred_check_branch
      %21 = sbr.rel (0) target = $region13
    $region12: #{tpu_custom_call.1} parent=1 // pred_region
      _
    $region13: #{tpu_custom_call.1} parent=1 // pred_fallthru
      _
    // Predicated region
    $region14: #{tpu_custom_call.1} parent=1 // pred_check
      _
    $region15: #{tpu_custom_call.1} parent=1 // pred_check_branch
      %23 = sbr.rel (0) target = $region17
    $region16: #{tpu_custom_call.1} parent=1 // pred_region
      _
    $region17: #{tpu_custom_call.1} parent=1 // pred_fallthru
      _
    // Predicated region
    $region18: #{tpu_custom_call.1} parent=1 // pred_check
      _
    $region19: #{tpu_custom_call.1} parent=1 // pred_check_branch
      %25 = sbr.rel (0) target = $region21
    $region20: #{tpu_custom_call.1} parent=1 // pred_region
      _
    $region21: #{tpu_custom_call.1} parent=1 // pred_fallthru
      _
    // Predicated region
    $region22: #{tpu_custom_call.1} parent=1 // pred_check
      _
    $region23: #{tpu_custom_call.1} parent=1 // pred_check_branch
      %27 = sbr.rel (0) target = $region25
    $region24: #{tpu_custom_call.1} parent=1 // pred_region
      _
    $region25: #{tpu_custom_call.1} parent=1 // pred_fallthru
      _
    // Predicated region
    $region26: #{tpu_custom_call.1} parent=1 // pred_check
      _
    $region27: #{tpu_custom_call.1} parent=1 // pred_check_branch
      %29 = sbr.rel (0) target = $region29
    $region28: #{tpu_custom_call.1} parent=1 // pred_region
      _
    $region29: #{tpu_custom_call.1} parent=1 // pred_fallthru
      _
    %v30 = vld [vmem:[%s0] sm:$0x3]
    %v31 = vld [vmem:[%s4] sm:$0xff]
    %v32 = vld [vmem:[%s4 + $0x8] sm:$0xff]
    %v33 = vld [vmem:[%s4 + $0x10] sm:$0xff]
    %v34 = vld [vmem:[%s4 + $0x18] sm:$0xff]
    %vm35 = vcmask 261120
    %v37 = vsel %vm35, %v30, 0
    %39 = vmatprep.subr.mxu0 0.0
    %40 = vmatpush1.msra.mxu0 %v31
    %41 = vmatprep.subr.mxu0 0.0
    %42 = vmatpush1.msra.mxu0 %v32
    %43 = vmatprep.subr.mxu0 0.0
    %44 = vmatpush1.msra.mxu0 %v33
    %45 = vmatprep.subr.mxu0 0.0
    %46 = vmatpush1.msra.mxu0 %v34
    %47 = vmatprep.subr.mxu0 0.0
    %48 = vmatpush1.msra.mxu0 0.0
    %49 = vmatprep.subr.mxu0 0.0
    %50 = vmatpush1.msra.mxu0 0.0
    %51 = vmatprep.subr.mxu0 0.0
    %52 = vmatpush1.msra.mxu0 0.0
    %53 = vmatprep.subr.mxu0 0.0
    %54 = vmatpush1.msra.mxu0 0.0
    %55 = vmatprep.subr.mxu0 0.0
    %56 = vmatpush1.msra.mxu0 0.0
    %57 = vmatprep.subr.mxu0 0.0
    %58 = vmatpush1.msra.mxu0 0.0
    %59 = vmatprep.subr.mxu0 0.0
    %60 = vmatpush1.msra.mxu0 0.0
    %61 = vmatprep.subr.mxu0 0.0
    %62 = vmatpush1.msra.mxu0 0.0
    %63 = vmatprep.subr.mxu0 0.0
    %64 = vmatpush1.msra.mxu0 0.0
    %65 = vmatprep.subr.mxu0 0.0
    %66 = vmatpush1.msra.mxu0 0.0
    %67 = vmatprep.subr.mxu0 0.0
    %68 = vmatpush1.msra.mxu0 0.0
    %69 = vmatprep.subr.mxu0 0.0
    %70 = vmatpush1.msra.mxu0 0.0
    %71 = vmatprep.subr.mxu0 0.0
    %72 = vmatpush1.msra.mxu0 0.0
    %73 = vmatprep.subr.mxu0 0.0
    %74 = vmatpush1.msra.mxu0 0.0
    %75 = vmatprep.subr.mxu0 0.0
    %76 = vmatpush1.msra.mxu0 0.0
    %77 = vmatprep.subr.mxu0 0.0
    %78 = vmatpush1.msra.mxu0 0.0
    %79 = vmatprep.subr.mxu0 0.0
    %80 = vmatpush1.msra.mxu0 0.0
    %81 = vmatprep.subr.mxu0 0.0
    %82 = vmatpush1.msra.mxu0 0.0
    %83 = vmatprep.subr.mxu0 0.0
    %84 = vmatpush1.msra.mxu0 0.0
    %85 = vmatprep.subr.mxu0 0.0
    %86 = vmatpush1.msra.mxu0 0.0
    %87 = vmatprep.subr.mxu0 0.0
    %88 = vmatpush1.msra.mxu0 0.0
    %89 = vmatprep.subr.mxu0 0.0
    %90 = vmatpush1.msra.mxu0 0.0
    %91 = vmatprep.subr.mxu0 0.0
    %92 = vmatpush1.msra.mxu0 0.0
    %93 = vmatprep.subr.mxu0 0.0
    %94 = vmatpush1.msra.mxu0 0.0
    %95 = vmatprep.subr.mxu0 0.0
    %96 = vmatpush1.msra.mxu0 0.0
    %97 = vmatprep.subr.mxu0 0.0
    %98 = vmatpush1.msra.mxu0 0.0
    %99 = vmatprep.subr.mxu0 0.0
    %100 = vmatpush1.msra.mxu0 0.0
    %101 = vmatprep.subr.mxu0 0.0
    %102 = vmatpush1.msra.mxu0 0.0
    %103 = vmatprep.mubr.f32.mxu0 0.0
    %104 = vmatmul.mubr.f32.gmra.mrb[0].mxu0 %v37
    %v105 = vpop.f32.mrb[0].mxu0
    %v106 = vadd.f32 0.0, %v105
    %v107 = vpop.f32.mrb[0].mxu0
    %108 = vdwg.mxu0
    %v109 = vld [vmem:[%s1] sm:$0xf]
    %v110 = vld [vmem:[%s1 + $0x4] sm:$0xf]
    %v111 = vld [vmem:[%s1 + $0x8] sm:$0xf]
    %v112 = vld [vmem:[%s1 + $0xc] sm:$0xf]
    %v113 = vld [vmem:[%s1 + $0x10] sm:$0xf]
    %v114 = vld [vmem:[%s1 + $0x14] sm:$0xf]
    %v115 = vld [vmem:[%s1 + $0x18] sm:$0xf]
    %v116 = vld [vmem:[%s1 + $0x1c] sm:$0xf]
    %v117 = vld [vmem:[%s1 + $0x20] sm:$0xf]
    %v118 = vld [vmem:[%s1 + $0x24] sm:$0xf]
    %v119 = vld [vmem:[%s1 + $0x28] sm:$0xf]
    %v120 = vld [vmem:[%s1 + $0x2c] sm:$0xf]
    %v121 = vld [vmem:[%s1 + $0x30] sm:$0xf]
    %v122 = vld [vmem:[%s1 + $0x34] sm:$0xf]
    %v123 = vld [vmem:[%s1 + $0x38] sm:$0xf]
    %v124 = vld [vmem:[%s1 + $0x3c] sm:$0xf]
    %v125 = vld [vmem:[%s1 + $0x40] sm:$0xf]
    %v126 = vld [vmem:[%s1 + $0x44] sm:$0xf]
    %v127 = vld [vmem:[%s1 + $0x48] sm:$0xf]
    %v128 = vld [vmem:[%s1 + $0x4c] sm:$0xf]
    %v129 = vld [vmem:[%s1 + $0x50] sm:$0xf]
    %v130 = vld [vmem:[%s1 + $0x54] sm:$0xf]
    %v131 = vld [vmem:[%s1 + $0x58] sm:$0xf]
    %v132 = vld [vmem:[%s1 + $0x5c] sm:$0xf]
    %v133 = vld [vmem:[%s1 + $0x60] sm:$0xf]
    %v134 = vld [vmem:[%s1 + $0x64] sm:$0xf]
    %v135 = vld [vmem:[%s1 + $0x68] sm:$0xf]
    %v136 = vld [vmem:[%s1 + $0x6c] sm:$0xf]
    %v137 = vld [vmem:[%s1 + $0x70] sm:$0xf]
    %v138 = vld [vmem:[%s1 + $0x74] sm:$0xf]
    %v139 = vld [vmem:[%s1 + $0x78] sm:$0xf]
    %v140 = vld [vmem:[%s1 + $0x7c] sm:$0xf]
    %v141 = vunpack.c.l.bf16 %v109
    %v142 = vunpack.c.l.bf16 %v110
    %v143 = vunpack.c.l.bf16 %v111
    %v144 = vunpack.c.l.bf16 %v112
    %v145 = vunpack.c.l.bf16 %v113
    %v146 = vunpack.c.l.bf16 %v114
    %v147 = vunpack.c.l.bf16 %v115
    %v148 = vunpack.c.l.bf16 %v116
    %v149 = vunpack.c.l.bf16 %v117
    %v150 = vunpack.c.l.bf16 %v118
    %v151 = vunpack.c.l.bf16 %v119
    %v152 = vunpack.c.l.bf16 %v120
    %v153 = vunpack.c.l.bf16 %v121
    %v154 = vunpack.c.l.bf16 %v122
    %v155 = vunpack.c.l.bf16 %v123
    %v156 = vunpack.c.l.bf16 %v124
    %v157 = vunpack.c.l.bf16 %v125
    %v158 = vunpack.c.l.bf16 %v126
    %v159 = vunpack.c.l.bf16 %v127
    %v160 = vunpack.c.l.bf16 %v128
    %v161 = vunpack.c.l.bf16 %v129
    %v162 = vunpack.c.l.bf16 %v130
    %v163 = vunpack.c.l.bf16 %v131
    %v164 = vunpack.c.l.bf16 %v132
    %v165 = vunpack.c.l.bf16 %v133
    %v166 = vunpack.c.l.bf16 %v134
    %v167 = vunpack.c.l.bf16 %v135
    %v168 = vunpack.c.l.bf16 %v136
    %v169 = vunpack.c.l.bf16 %v137
    %v170 = vunpack.c.l.bf16 %v138
    %v171 = vunpack.c.l.bf16 %v139
    %v172 = vunpack.c.l.bf16 %v140
    %v173 = vld [vmem:[%s5] sm:$0xff]
    %v174 = vld [vmem:[%s5 + $0x8] sm:$0x3]
    %vm175 = vcmask 80896
    %v177 = vsel %vm175, %v141, 0
    %v180 = vsel %vm175, %v142, 0
    %v183 = vsel %vm175, %v143, 0
    %v186 = vsel %vm175, %v144, 0
    %v189 = vsel %vm175, %v145, 0
    %v192 = vsel %vm175, %v146, 0
    %v195 = vsel %vm175, %v147, 0
    %v198 = vsel %vm175, %v148, 0
    %v201 = vsel %vm175, %v149, 0
    %v204 = vsel %vm175, %v150, 0
    %v207 = vsel %vm175, %v151, 0
    %v210 = vsel %vm175, %v152, 0
    %v213 = vsel %vm175, %v153, 0
    %v216 = vsel %vm175, %v154, 0
    %v219 = vsel %vm175, %v155, 0
    %v222 = vsel %vm175, %v156, 0
    %v225 = vsel %vm175, %v157, 0
    %v228 = vsel %vm175, %v158, 0
    %v231 = vsel %vm175, %v159, 0
    %v234 = vsel %vm175, %v160, 0
    %v237 = vsel %vm175, %v161, 0
    %v240 = vsel %vm175, %v162, 0
    %v243 = vsel %vm175, %v163, 0
    %v246 = vsel %vm175, %v164, 0
    %v249 = vsel %vm175, %v165, 0
    %v252 = vsel %vm175, %v166, 0
    %v255 = vsel %vm175, %v167, 0
    %v258 = vsel %vm175, %v168, 0
    %v261 = vsel %vm175, %v169, 0
    %v264 = vsel %vm175, %v170, 0
    %v267 = vsel %vm175, %v171, 0
    %v270 = vsel %vm175, %v172, 0
    %vm272 = vcmask 1041408
    %v274 = vsel %vm272, %v174, 0
    %276 = vmatprep.subr.mxu0 0.0
    %277 = vmatpush1.msra.mxu0 %v173
    %278 = vmatprep.subr.mxu0 0.0
    %279 = vmatpush1.msra.mxu0 %v274
    %280 = vmatprep.subr.mxu0 0.0
    %281 = vmatpush1.msra.mxu0 0.0
    %282 = vmatprep.subr.mxu0 0.0
    %283 = vmatpush1.msra.mxu0 0.0
    %284 = vmatprep.subr.mxu0 0.0
    %285 = vmatpush1.msra.mxu0 0.0
    %286 = vmatprep.subr.mxu0 0.0
    %287 = vmatpush1.msra.mxu0 0.0
    %288 = vmatprep.subr.mxu0 0.0
    %289 = vmatpush1.msra.mxu0 0.0
    %290 = vmatprep.subr.mxu0 0.0
    %291 = vmatpush1.msra.mxu0 0.0
    %292 = vmatprep.subr.mxu0 0.0
    %293 = vmatpush1.msra.mxu0 0.0
    %294 = vmatprep.subr.mxu0 0.0
    %295 = vmatpush1.msra.mxu0 0.0
    %296 = vmatprep.subr.mxu0 0.0
    %297 = vmatpush1.msra.mxu0 0.0
    %298 = vmatprep.subr.mxu0 0.0
    %299 = vmatpush1.msra.mxu0 0.0
    %300 = vmatprep.subr.mxu0 0.0
    %301 = vmatpush1.msra.mxu0 0.0
    %302 = vmatprep.subr.mxu0 0.0
    %303 = vmatpush1.msra.mxu0 0.0
    %304 = vmatprep.subr.mxu0 0.0
    %305 = vmatpush1.msra.mxu0 0.0
    %306 = vmatprep.subr.mxu0 0.0
    %307 = vmatpush1.msra.mxu0 0.0
    %308 = vmatprep.subr.mxu0 0.0
    %309 = vmatpush1.msra.mxu0 0.0
    %310 = vmatprep.subr.mxu0 0.0
    %311 = vmatpush1.msra.mxu0 0.0
    %312 = vmatprep.subr.mxu0 0.0
    %313 = vmatpush1.msra.mxu0 0.0
    %314 = vmatprep.subr.mxu0 0.0
    %315 = vmatpush1.msra.mxu0 0.0
    %316 = vmatprep.subr.mxu0 0.0
    %317 = vmatpush1.msra.mxu0 0.0
    %318 = vmatprep.subr.mxu0 0.0
    %319 = vmatpush1.msra.mxu0 0.0
    %320 = vmatprep.subr.mxu0 0.0
    %321 = vmatpush1.msra.mxu0 0.0
    %322 = vmatprep.subr.mxu0 0.0
    %323 = vmatpush1.msra.mxu0 0.0
    %324 = vmatprep.subr.mxu0 0.0
    %325 = vmatpush1.msra.mxu0 0.0
    %326 = vmatprep.subr.mxu0 0.0
    %327 = vmatpush1.msra.mxu0 0.0
    %328 = vmatprep.subr.mxu0 0.0
    %329 = vmatpush1.msra.mxu0 0.0
    %330 = vmatprep.subr.mxu0 0.0
    %331 = vmatpush1.msra.mxu0 0.0
    %332 = vmatprep.subr.mxu0 0.0
    %333 = vmatpush1.msra.mxu0 0.0
    %334 = vmatprep.subr.mxu0 0.0
    %335 = vmatpush1.msra.mxu0 0.0
    %336 = vmatprep.subr.mxu0 0.0
    %337 = vmatpush1.msra.mxu0 0.0
    %338 = vmatprep.subr.mxu0 0.0
    %339 = vmatpush1.msra.mxu0 0.0
    %340 = vmatprep.mubr.f32.mxu0 0.0
    %341 = vmatmul.mubr.f32.gmra.mrb[0].mxu0 %v177
    %v342 = vpop.f32.mrb[0].mxu0
    %v343 = vadd.f32 0.0, %v342
    %v344 = vpop.f32.mrb[0].mxu0
    %345 = vmatprep.mubr.f32.mxu0 0.0
    %346 = vmatmul.mubr.f32.gmra.mrb[0].mxu0 %v180
    %v347 = vpop.f32.mrb[0].mxu0
    %v348 = vadd.f32 0.0, %v347
    %v349 = vpop.f32.mrb[0].mxu0
    %350 = vmatprep.mubr.f32.mxu0 0.0
    %351 = vmatmul.mubr.f32.gmra.mrb[0].mxu0 %v183
    %v352 = vpop.f32.mrb[0].mxu0
    %v353 = vadd.f32 0.0, %v352
    %v354 = vpop.f32.mrb[0].mxu0
    %355 = vmatprep.mubr.f32.mxu0 0.0
    %356 = vmatmul.mubr.f32.gmra.mrb[0].mxu0 %v186
    %v357 = vpop.f32.mrb[0].mxu0
    %v358 = vadd.f32 0.0, %v357
    %v359 = vpop.f32.mrb[0].mxu0
    %360 = vmatprep.mubr.f32.mxu0 0.0
    %361 = vmatmul.mubr.f32.gmra.mrb[0].mxu0 %v189
    %v362 = vpop.f32.mrb[0].mxu0
    %v363 = vadd.f32 0.0, %v362
    %v364 = vpop.f32.mrb[0].mxu0
    %365 = vmatprep.mubr.f32.mxu0 0.0
    %366 = vmatmul.mubr.f32.gmra.mrb[0].mxu0 %v192
    %v367 = vpop.f32.mrb[0].mxu0
    %v368 = vadd.f32 0.0, %v367
    %v369 = vpop.f32.mrb[0].mxu0
    %370 = vmatprep.mubr.f32.mxu0 0.0
    %371 = vmatmul.mubr.f32.gmra.mrb[0].mxu0 %v195
    %v372 = vpop.f32.mrb[0].mxu0
    %v373 = vadd.f32 0.0, %v372
    %v374 = vpop.f32.mrb[0].mxu0
    %375 = vmatprep.mubr.f32.mxu0 0.0
    %376 = vmatmul.mubr.f32.gmra.mrb[0].mxu0 %v198
    %v377 = vpop.f32.mrb[0].mxu0
    %v378 = vadd.f32 0.0, %v377
    %v379 = vpop.f32.mrb[0].mxu0
    %380 = vmatprep.mubr.f32.mxu0 0.0
    %381 = vmatmul.mubr.f32.gmra.mrb[0].mxu0 %v201
    %v382 = vpop.f32.mrb[0].mxu0
    %v383 = vadd.f32 0.0, %v382
    %v384 = vpop.f32.mrb[0].mxu0
    %385 = vmatprep.mubr.f32.mxu0 0.0
    %386 = vmatmul.mubr.f32.gmra.mrb[0].mxu0 %v204
    %v387 = vpop.f32.mrb[0].mxu0
    %v388 = vadd.f32 0.0, %v387
    %v389 = vpop.f32.mrb[0].mxu0
    %390 = vmatprep.mubr.f32.mxu0 0.0
    %391 = vmatmul.mubr.f32.gmra.mrb[0].mxu0 %v207
    %v392 = vpop.f32.mrb[0].mxu0
    %v393 = vadd.f32 0.0, %v392
    %v394 = vpop.f32.mrb[0].mxu0
    %395 = vmatprep.mubr.f32.mxu0 0.0
    %396 = vmatmul.mubr.f32.gmra.mrb[0].mxu0 %v210
    %v397 = vpop.f32.mrb[0].mxu0
    %v398 = vadd.f32 0.0, %v397
    %v399 = vpop.f32.mrb[0].mxu0
    %400 = vmatprep.mubr.f32.mxu0 0.0
    %401 = vmatmul.mubr.f32.gmra.mrb[0].mxu0 %v213
    %v402 = vpop.f32.mrb[0].mxu0
    %v403 = vadd.f32 0.0, %v402
    %v404 = vpop.f32.mrb[0].mxu0
    %405 = vmatprep.mubr.f32.mxu0 0.0
    %406 = vmatmul.mubr.f32.gmra.mrb[0].mxu0 %v216
    %v407 = vpop.f32.mrb[0].mxu0
    %v408 = vadd.f32 0.0, %v407
    %v409 = vpop.f32.mrb[0].mxu0
    %410 = vmatprep.mubr.f32.mxu0 0.0
    %411 = vmatmul.mubr.f32.gmra.mrb[0].mxu0 %v219
    %v412 = vpop.f32.mrb[0].mxu0
    %v413 = vadd.f32 0.0, %v412
    %v414 = vpop.f32.mrb[0].mxu0
    %415 = vmatprep.mubr.f32.mxu0 0.0
    %416 = vmatmul.mubr.f32.gmra.mrb[0].mxu0 %v222
    %v417 = vpop.f32.mrb[0].mxu0
    %v418 = vadd.f32 0.0, %v417
    %v419 = vpop.f32.mrb[0].mxu0
    %420 = vmatprep.mubr.f32.mxu0 0.0
    %421 = vmatmul.mubr.f32.gmra.mrb[0].mxu0 %v225
    %v422 = vpop.f32.mrb[0].mxu0
    %v423 = vadd.f32 0.0, %v422
    %v424 = vpop.f32.mrb[0].mxu0
    %425 = vmatprep.mubr.f32.mxu0 0.0
    %426 = vmatmul.mubr.f32.gmra.mrb[0].mxu0 %v228
    %v427 = vpop.f32.mrb[0].mxu0
    %v428 = vadd.f32 0.0, %v427
    %v429 = vpop.f32.mrb[0].mxu0
    %430 = vmatprep.mubr.f32.mxu0 0.0
    %431 = vmatmul.mubr.f32.gmra.mrb[0].mxu0 %v231
    %v432 = vpop.f32.mrb[0].mxu0
    %v433 = vadd.f32 0.0, %v432
    %v434 = vpop.f32.mrb[0].mxu0
    %435 = vmatprep.mubr.f32.mxu0 0.0
    %436 = vmatmul.mubr.f32.gmra.mrb[0].mxu0 %v234
    %v437 = vpop.f32.mrb[0].mxu0
    %v438 = vadd.f32 0.0, %v437
    %v439 = vpop.f32.mrb[0].mxu0
    %440 = vmatprep.mubr.f32.mxu0 0.0
    %441 = vmatmul.mubr.f32.gmra.mrb[0].mxu0 %v237
    %v442 = vpop.f32.mrb[0].mxu0
    %v443 = vadd.f32 0.0, %v442
    %v444 = vpop.f32.mrb[0].mxu0
    %445 = vmatprep.mubr.f32.mxu0 0.0
    %446 = vmatmul.mubr.f32.gmra.mrb[0].mxu0 %v240
    %v447 = vpop.f32.mrb[0].mxu0
    %v448 = vadd.f32 0.0, %v447
    %v449 = vpop.f32.mrb[0].mxu0
    %450 = vmatprep.mubr.f32.mxu0 0.0
    %451 = vmatmul.mubr.f32.gmra.mrb[0].mxu0 %v243
    %v452 = vpop.f32.mrb[0].mxu0
    %v453 = vadd.f32 0.0, %v452
    %v454 = vpop.f32.mrb[0].mxu0
    %455 = vmatprep.mubr.f32.mxu0 0.0
    %456 = vmatmul.mubr.f32.gmra.mrb[0].mxu0 %v246
    %v457 = vpop.f32.mrb[0].mxu0
    %v458 = vadd.f32 0.0, %v457
    %v459 = vpop.f32.mrb[0].mxu0
    %460 = vmatprep.mubr.f32.mxu0 0.0
    %461 = vmatmul.mubr.f32.gmra.mrb[0].mxu0 %v249
    %v462 = vpop.f32.mrb[0].mxu0
    %v463 = vadd.f32 0.0, %v462
    %v464 = vpop.f32.mrb[0].mxu0
    %465 = vmatprep.mubr.f32.mxu0 0.0
    %466 = vmatmul.mubr.f32.gmra.mrb[0].mxu0 %v252
    %v467 = vpop.f32.mrb[0].mxu0
    %v468 = vadd.f32 0.0, %v467
    %v469 = vpop.f32.mrb[0].mxu0
    %470 = vmatprep.mubr.f32.mxu0 0.0
    %471 = vmatmul.mubr.f32.gmra.mrb[0].mxu0 %v255
    %v472 = vpop.f32.mrb[0].mxu0
    %v473 = vadd.f32 0.0, %v472
    %v474 = vpop.f32.mrb[0].mxu0
    %475 = vmatprep.mubr.f32.mxu0 0.0
    %476 = vmatmul.mubr.f32.gmra.mrb[0].mxu0 %v258
    %v477 = vpop.f32.mrb[0].mxu0
    %v478 = vadd.f32 0.0, %v477
    %v479 = vpop.f32.mrb[0].mxu0
    %480 = vmatprep.mubr.f32.mxu0 0.0
    %481 = vmatmul.mubr.f32.gmra.mrb[0].mxu0 %v261
    %v482 = vpop.f32.mrb[0].mxu0
    %v483 = vadd.f32 0.0, %v482
    %v484 = vpop.f32.mrb[0].mxu0
    %485 = vmatprep.mubr.f32.mxu0 0.0
    %486 = vmatmul.mubr.f32.gmra.mrb[0].mxu0 %v264
    %v487 = vpop.f32.mrb[0].mxu0
    %v488 = vadd.f32 0.0, %v487
    %v489 = vpop.f32.mrb[0].mxu0
    %490 = vmatprep.mubr.f32.mxu0 0.0
    %491 = vmatmul.mubr.f32.gmra.mrb[0].mxu0 %v267
    %v492 = vpop.f32.mrb[0].mxu0
    %v493 = vadd.f32 0.0, %v492
    %v494 = vpop.f32.mrb[0].mxu0
    %495 = vmatprep.mubr.f32.mxu0 0.0
    %496 = vmatmul.mubr.f32.gmra.mrb[0].mxu0 %v270
    %v497 = vpop.f32.mrb[0].mxu0
    %v498 = vadd.f32 0.0, %v497
    %v499 = vpop.f32.mrb[0].mxu0
    %500 = vdwg.mxu0
    %v501 = vld [vmem:[%s2] sm:$0xf]
    %v502 = vld [vmem:[%s2 + $0x4] sm:$0xf]
    %v503 = vld [vmem:[%s2 + $0x8] sm:$0xf]
    %v504 = vld [vmem:[%s2 + $0xc] sm:$0xf]
    %v505 = vld [vmem:[%s2 + $0x10] sm:$0xf]
    %v506 = vld [vmem:[%s2 + $0x14] sm:$0xf]
    %v507 = vld [vmem:[%s2 + $0x18] sm:$0xf]
    %v508 = vld [vmem:[%s2 + $0x1c] sm:$0xf]
    %v509 = vld [vmem:[%s2 + $0x20] sm:$0xf]
    %v510 = vld [vmem:[%s2 + $0x24] sm:$0xf]
    %v511 = vld [vmem:[%s2 + $0x28] sm:$0xf]
    %v512 = vld [vmem:[%s2 + $0x2c] sm:$0xf]
    %v513 = vld [vmem:[%s2 + $0x30] sm:$0xf]
    %v514 = vld [vmem:[%s2 + $0x34] sm:$0xf]
    %v515 = vld [vmem:[%s2 + $0x38] sm:$0xf]
    %v516 = vld [vmem:[%s2 + $0x3c] sm:$0xf]
    %v517 = vld [vmem:[%s2 + $0x40] sm:$0xf]
    %v518 = vld [vmem:[%s2 + $0x44] sm:$0xf]
    %v519 = vld [vmem:[%s2 + $0x48] sm:$0xf]
    %v520 = vld [vmem:[%s2 + $0x4c] sm:$0xf]
    %v521 = vld [vmem:[%s2 + $0x50] sm:$0xf]
    %v522 = vld [vmem:[%s2 + $0x54] sm:$0xf]
    %v523 = vld [vmem:[%s2 + $0x58] sm:$0xf]
    %v524 = vld [vmem:[%s2 + $0x5c] sm:$0xf]
    %v525 = vld [vmem:[%s2 + $0x60] sm:$0xf]
    %v526 = vld [vmem:[%s2 + $0x64] sm:$0xf]
    %v527 = vld [vmem:[%s2 + $0x68] sm:$0xf]
    %v528 = vld [vmem:[%s2 + $0x6c] sm:$0xf]
    %v529 = vld [vmem:[%s2 + $0x70] sm:$0xf]
    %v530 = vld [vmem:[%s2 + $0x74] sm:$0xf]
    %v531 = vld [vmem:[%s2 + $0x78] sm:$0xf]
    %v532 = vld [vmem:[%s2 + $0x7c] sm:$0xf]
    %v533 = vunpack.c.l.bf16 %v501
    %v534 = vunpack.c.l.bf16 %v502
    %v535 = vunpack.c.l.bf16 %v503
    %v536 = vunpack.c.l.bf16 %v504
    %v537 = vunpack.c.l.bf16 %v505
    %v538 = vunpack.c.l.bf16 %v506
    %v539 = vunpack.c.l.bf16 %v507
    %v540 = vunpack.c.l.bf16 %v508
    %v541 = vunpack.c.l.bf16 %v509
    %v542 = vunpack.c.l.bf16 %v510
    %v543 = vunpack.c.l.bf16 %v511
    %v544 = vunpack.c.l.bf16 %v512
    %v545 = vunpack.c.l.bf16 %v513
    %v546 = vunpack.c.l.bf16 %v514
    %v547 = vunpack.c.l.bf16 %v515
    %v548 = vunpack.c.l.bf16 %v516
    %v549 = vunpack.c.l.bf16 %v517
    %v550 = vunpack.c.l.bf16 %v518
    %v551 = vunpack.c.l.bf16 %v519
    %v552 = vunpack.c.l.bf16 %v520
    %v553 = vunpack.c.l.bf16 %v521
    %v554 = vunpack.c.l.bf16 %v522
    %v555 = vunpack.c.l.bf16 %v523
    %v556 = vunpack.c.l.bf16 %v524
    %v557 = vunpack.c.l.bf16 %v525
    %v558 = vunpack.c.l.bf16 %v526
    %v559 = vunpack.c.l.bf16 %v527
    %v560 = vunpack.c.l.bf16 %v528
    %v561 = vunpack.c.l.bf16 %v529
    %v562 = vunpack.c.l.bf16 %v530
    %v563 = vunpack.c.l.bf16 %v531
    %v564 = vunpack.c.l.bf16 %v532
    %v567 = vunpack.c.l.s4 1966171168
    %v568 = vunpack.c.0.s8 %v567
    %v569 = vlaneseq
    %v570 = vshrl.u32 %v569, 7
    %v571 = vsub.s32 %v568, %v570
    %v572 = vrot.slane %v106, %v571
    %v573 = vcombine.high %v572, %v572
    %v575 = vunpack.c.l.s4 1966171168
    %v576 = vunpack.c.0.s8 %v575
    %v577 = vlaneseq
    %v578 = vshrl.u32 %v577, 7
    %v579 = vsub.s32 %v576, %v578
    %v580 = vrot.slane %v572, %v579
    %v582 = vunpack.c.l.s4 1966171168
    %v583 = vunpack.c.0.s8 %v582
    %v584 = vlaneseq
    %v585 = vshrl.u32 %v584, 7
    %v586 = vsub.s32 %v583, %v585
    %v587 = vrot.slane %v573, %v586
    %v588 = vlaneseq
    %v589 = vshrl.u32 %v588, 7
    %v590 = vsub.s32 0, %v589
    %v591 = vrot.slane %v580, %v590
    %v592 = vlaneseq
    %v593 = vshrl.u32 %v592, 7
    %v594 = vsub.s32 0, %v593
    %v595 = vrot.slane %v587, %v594
    %v598 = vadd.f32 %v591, %v343
    %v599 = vadd.f32 %v591, %v348
    %v600 = vadd.f32 %v591, %v353
    %v601 = vadd.f32 %v591, %v358
    %v602 = vadd.f32 %v591, %v363
    %v603 = vadd.f32 %v591, %v368
    %v604 = vadd.f32 %v591, %v373
    %v605 = vadd.f32 %v591, %v378
    %v606 = vadd.f32 %v591, %v383
    %v607 = vadd.f32 %v591, %v388
    %v608 = vadd.f32 %v591, %v393
    %v609 = vadd.f32 %v591, %v398
    %v610 = vadd.f32 %v591, %v403
    %v611 = vadd.f32 %v591, %v408
    %v612 = vadd.f32 %v591, %v413
    %v613 = vadd.f32 %v591, %v418
    %v614 = vadd.f32 %v595, %v423
    %v615 = vadd.f32 %v595, %v428
    %v616 = vadd.f32 %v595, %v433
    %v617 = vadd.f32 %v595, %v438
    %v618 = vadd.f32 %v595, %v443
    %v619 = vadd.f32 %v595, %v448
    %v620 = vadd.f32 %v595, %v453
    %v621 = vadd.f32 %v595, %v458
    %v622 = vadd.f32 %v595, %v463
    %v623 = vadd.f32 %v595, %v468
    %v624 = vadd.f32 %v595, %v473
    %v625 = vadd.f32 %v595, %v478
    %v626 = vadd.f32 %v595, %v483
    %v627 = vadd.f32 %v595, %v488
    %v628 = vadd.f32 %v595, %v493
    %v629 = vadd.f32 %v595, %v498
    %v630 = vadd.f32 %v598, %v533
    %v631 = vadd.f32 %v599, %v534
    %v632 = vadd.f32 %v600, %v535
    %v633 = vadd.f32 %v601, %v536
    %v634 = vadd.f32 %v602, %v537
    %v635 = vadd.f32 %v603, %v538
    %v636 = vadd.f32 %v604, %v539
    %v637 = vadd.f32 %v605, %v540
    %v638 = vadd.f32 %v606, %v541
    %v639 = vadd.f32 %v607, %v542
    %v640 = vadd.f32 %v608, %v543
    %v641 = vadd.f32 %v609, %v544
    %v642 = vadd.f32 %v610, %v545
    %v643 = vadd.f32 %v611, %v546
    %v644 = vadd.f32 %v612, %v547
    %v645 = vadd.f32 %v613, %v548
    %v646 = vadd.f32 %v614, %v549
    %v647 = vadd.f32 %v615, %v550
    %v648 = vadd.f32 %v616, %v551
    %v649 = vadd.f32 %v617, %v552
    %v650 = vadd.f32 %v618, %v553
    %v651 = vadd.f32 %v619, %v554
    %v652 = vadd.f32 %v620, %v555
    %v653 = vadd.f32 %v621, %v556
    %v654 = vadd.f32 %v622, %v557
    %v655 = vadd.f32 %v623, %v558
    %v656 = vadd.f32 %v624, %v559
    %v657 = vadd.f32 %v625, %v560
    %v658 = vadd.f32 %v626, %v561
    %v659 = vadd.f32 %v627, %v562
    %v660 = vadd.f32 %v628, %v563
    %v661 = vadd.f32 %v629, %v564
    %v662 = vtanh.pop %v630
    %v663 = vtanh.pop %v631
    %v664 = vtanh.pop %v632
    %v665 = vtanh.pop %v633
    %v666 = vtanh.pop %v634
    %v667 = vtanh.pop %v635
    %v668 = vtanh.pop %v636
    %v669 = vtanh.pop %v637
    %v670 = vtanh.pop %v638
    %v671 = vtanh.pop %v639
    %v672 = vtanh.pop %v640
    %v673 = vtanh.pop %v641
    %v674 = vtanh.pop %v642
    %v675 = vtanh.pop %v643
    %v676 = vtanh.pop %v644
    %v677 = vtanh.pop %v645
    %v678 = vtanh.pop %v646
    %v679 = vtanh.pop %v647
    %v680 = vtanh.pop %v648
    %v681 = vtanh.pop %v649
    %v682 = vtanh.pop %v650
    %v683 = vtanh.pop %v651
    %v684 = vtanh.pop %v652
    %v685 = vtanh.pop %v653
    %v686 = vtanh.pop %v654
    %v687 = vtanh.pop %v655
    %v688 = vtanh.pop %v656
    %v689 = vtanh.pop %v657
    %v690 = vtanh.pop %v658
    %v691 = vtanh.pop %v659
    %v692 = vtanh.pop %v660
    %v693 = vtanh.pop %v661
    %v694 = vld [vmem:[%s6] sm:$0x1]
    %v696 = vlaneseq
    %v697 = vshrl.u32 %v696, 7
    %v698 = vsub.s32 0, %v697
    %v699 = vrot.slane %v694, %v698
    %v701 = vmul.f32 %v662, %v699
    %v702 = vmul.f32 %v663, %v699
    %v703 = vmul.f32 %v664, %v699
    %v704 = vmul.f32 %v665, %v699
    %v705 = vmul.f32 %v666, %v699
    %v706 = vmul.f32 %v667, %v699
    %v707 = vmul.f32 %v668, %v699
    %v708 = vmul.f32 %v669, %v699
    %v709 = vmul.f32 %v670, %v699
    %v710 = vmul.f32 %v671, %v699
    %v711 = vmul.f32 %v672, %v699
    %v712 = vmul.f32 %v673, %v699
    %v713 = vmul.f32 %v674, %v699
    %v714 = vmul.f32 %v675, %v699
    %v715 = vmul.f32 %v676, %v699
    %v716 = vmul.f32 %v677, %v699
    %v717 = vmul.f32 %v678, %v699
    %v718 = vmul.f32 %v679, %v699
    %v719 = vmul.f32 %v680, %v699
    %v720 = vmul.f32 %v681, %v699
    %v721 = vmul.f32 %v682, %v699
    %v722 = vmul.f32 %v683, %v699
    %v723 = vmul.f32 %v684, %v699
    %v724 = vmul.f32 %v685, %v699
    %v725 = vmul.f32 %v686, %v699
    %v726 = vmul.f32 %v687, %v699
    %v727 = vmul.f32 %v688, %v699
    %v728 = vmul.f32 %v689, %v699
    %v729 = vmul.f32 %v690, %v699
    %v730 = vmul.f32 %v691, %v699
    %v731 = vmul.f32 %v692, %v699
    %v732 = vmul.f32 %v693, %v699
    %v733 = vsel %vm35, %v701, 0.0
    %734 = vadd.xlane.f32.xlu0 %v733
    %v735 = vpop.xlane.xlu0 %734
    %v736 = vsel %vm35, %v702, 0.0
    %737 = vadd.xlane.f32.xlu0 %v736
    %v738 = vpop.xlane.xlu0 %737
    %v739 = vsel %vm35, %v703, 0.0
    %740 = vadd.xlane.f32.xlu0 %v739
    %v741 = vpop.xlane.xlu0 %740
    %v742 = vsel %vm35, %v704, 0.0
    %743 = vadd.xlane.f32.xlu0 %v742
    %v744 = vpop.xlane.xlu0 %743
    %v745 = vsel %vm35, %v705, 0.0
    %746 = vadd.xlane.f32.xlu0 %v745
    %v747 = vpop.xlane.xlu0 %746
    %v748 = vsel %vm35, %v706, 0.0
    %749 = vadd.xlane.f32.xlu0 %v748
    %v750 = vpop.xlane.xlu0 %749
    %v751 = vsel %vm35, %v707, 0.0
    %752 = vadd.xlane.f32.xlu0 %v751
    %v753 = vpop.xlane.xlu0 %752
    %v754 = vsel %vm35, %v708, 0.0
    %755 = vadd.xlane.f32.xlu0 %v754
    %v756 = vpop.xlane.xlu0 %755
    %v757 = vsel %vm35, %v709, 0.0
    %758 = vadd.xlane.f32.xlu0 %v757
    %v759 = vpop.xlane.xlu0 %758
    %v760 = vsel %vm35, %v710, 0.0
    %761 = vadd.xlane.f32.xlu0 %v760
    %v762 = vpop.xlane.xlu0 %761
    %v763 = vsel %vm35, %v711, 0.0
    %764 = vadd.xlane.f32.xlu0 %v763
    %v765 = vpop.xlane.xlu0 %764
    %v766 = vsel %vm35, %v712, 0.0
    %767 = vadd.xlane.f32.xlu0 %v766
    %v768 = vpop.xlane.xlu0 %767
    %v769 = vsel %vm35, %v713, 0.0
    %770 = vadd.xlane.f32.xlu0 %v769
    %v771 = vpop.xlane.xlu0 %770
    %v772 = vsel %vm35, %v714, 0.0
    %773 = vadd.xlane.f32.xlu0 %v772
    %v774 = vpop.xlane.xlu0 %773
    %v775 = vsel %vm35, %v715, 0.0
    %776 = vadd.xlane.f32.xlu0 %v775
    %v777 = vpop.xlane.xlu0 %776
    %v778 = vsel %vm35, %v716, 0.0
    %779 = vadd.xlane.f32.xlu0 %v778
    %v780 = vpop.xlane.xlu0 %779
    %v781 = vsel %vm35, %v717, 0.0
    %782 = vadd.xlane.f32.xlu0 %v781
    %v783 = vpop.xlane.xlu0 %782
    %v784 = vsel %vm35, %v718, 0.0
    %785 = vadd.xlane.f32.xlu0 %v784
    %v786 = vpop.xlane.xlu0 %785
    %v787 = vsel %vm35, %v719, 0.0
    %788 = vadd.xlane.f32.xlu0 %v787
    %v789 = vpop.xlane.xlu0 %788
    %v790 = vsel %vm35, %v720, 0.0
    %791 = vadd.xlane.f32.xlu0 %v790
    %v792 = vpop.xlane.xlu0 %791
    %v793 = vsel %vm35, %v721, 0.0
    %794 = vadd.xlane.f32.xlu0 %v793
    %v795 = vpop.xlane.xlu0 %794
    %v796 = vsel %vm35, %v722, 0.0
    %797 = vadd.xlane.f32.xlu0 %v796
    %v798 = vpop.xlane.xlu0 %797
    %v799 = vsel %vm35, %v723, 0.0
    %800 = vadd.xlane.f32.xlu0 %v799
    %v801 = vpop.xlane.xlu0 %800
    %v802 = vsel %vm35, %v724, 0.0
    %803 = vadd.xlane.f32.xlu0 %v802
    %v804 = vpop.xlane.xlu0 %803
    %v805 = vsel %vm35, %v725, 0.0
    %806 = vadd.xlane.f32.xlu0 %v805
    %v807 = vpop.xlane.xlu0 %806
    %v808 = vsel %vm35, %v726, 0.0
    %809 = vadd.xlane.f32.xlu0 %v808
    %v810 = vpop.xlane.xlu0 %809
    %v811 = vsel %vm35, %v727, 0.0
    %812 = vadd.xlane.f32.xlu0 %v811
    %v813 = vpop.xlane.xlu0 %812
    %v814 = vsel %vm35, %v728, 0.0
    %815 = vadd.xlane.f32.xlu0 %v814
    %v816 = vpop.xlane.xlu0 %815
    %v817 = vsel %vm35, %v729, 0.0
    %818 = vadd.xlane.f32.xlu0 %v817
    %v819 = vpop.xlane.xlu0 %818
    %v820 = vsel %vm35, %v730, 0.0
    %821 = vadd.xlane.f32.xlu0 %v820
    %v822 = vpop.xlane.xlu0 %821
    %v823 = vsel %vm35, %v731, 0.0
    %824 = vadd.xlane.f32.xlu0 %v823
    %v825 = vpop.xlane.xlu0 %824
    %v826 = vsel %vm35, %v732, 0.0
    %827 = vadd.xlane.f32.xlu0 %v826
    %v828 = vpop.xlane.xlu0 %827
    %v829 = vlaneseq
    %v830 = vand.u32 %v829, 127
    %vm831 = vcmp.lt.s32.totalorder %v830, 16
    %v864 = vlaneseq
    %v865 = vshrl.u32 %v864, 7
    %v866 = vsub.s32 %v830, %v865
    %v867 = vrot.slane %v735, %v866
    %v868 = vadd.s32 %v830, 4294967288
    %v869 = vlaneseq
    %v870 = vshrl.u32 %v869, 7
    %v871 = vsub.s32 %v868, %v870
    %v872 = vrot.slane %v738, %v871
    %vm873 = vcmask 130112
    %v874 = vsel %vm873, %v872, %v867
    %v875 = vadd.s32 %v830, 4294967280
    %v876 = vlaneseq
    %v877 = vshrl.u32 %v876, 7
    %v878 = vsub.s32 %v875, %v877
    %v879 = vrot.slane %v741, %v878
    %vm880 = vcmask 195712
    %v881 = vsel %vm880, %v879, %v874
    %v882 = vadd.s32 %v830, 4294967272
    %v883 = vlaneseq
    %v884 = vshrl.u32 %v883, 7
    %v885 = vsub.s32 %v882, %v884
    %v886 = vrot.slane %v744, %v885
    %vm887 = vcmask 261312
    %v888 = vsel %vm887, %v886, %v881
    %v889 = vadd.s32 %v830, 4294967264
    %v890 = vlaneseq
    %v891 = vshrl.u32 %v890, 7
    %v892 = vsub.s32 %v889, %v891
    %v893 = vrot.slane %v747, %v892
    %vm894 = vcmask 326912
    %v895 = vsel %vm894, %v893, %v888
    %v896 = vadd.s32 %v830, 4294967256
    %v897 = vlaneseq
    %v898 = vshrl.u32 %v897, 7
    %v899 = vsub.s32 %v896, %v898
    %v900 = vrot.slane %v750, %v899
    %vm901 = vcmask 392512
    %v902 = vsel %vm901, %v900, %v895
    %v903 = vadd.s32 %v830, 4294967248
    %v904 = vlaneseq
    %v905 = vshrl.u32 %v904, 7
    %v906 = vsub.s32 %v903, %v905
    %v907 = vrot.slane %v753, %v906
    %vm908 = vcmask 458112
    %v909 = vsel %vm908, %v907, %v902
    %v910 = vadd.s32 %v830, 4294967240
    %v911 = vlaneseq
    %v912 = vshrl.u32 %v911, 7
    %v913 = vsub.s32 %v910, %v912
    %v914 = vrot.slane %v756, %v913
    %vm915 = vcmask 523712
    %v916 = vsel %vm915, %v914, %v909
    %v917 = vadd.s32 %v830, 4294967232
    %v918 = vlaneseq
    %v919 = vshrl.u32 %v918, 7
    %v920 = vsub.s32 %v917, %v919
    %v921 = vrot.slane %v759, %v920
    %vm922 = vcmask 589312
    %v923 = vsel %vm922, %v921, %v916
    %v924 = vadd.s32 %v830, 4294967224
    %v925 = vlaneseq
    %v926 = vshrl.u32 %v925, 7
    %v927 = vsub.s32 %v924, %v926
    %v928 = vrot.slane %v762, %v927
    %vm929 = vcmask 654912
    %v930 = vsel %vm929, %v928, %v923
    %v931 = vadd.s32 %v830, 4294967216
    %v932 = vlaneseq
    %v933 = vshrl.u32 %v932, 7
    %v934 = vsub.s32 %v931, %v933
    %v935 = vrot.slane %v765, %v934
    %vm936 = vcmask 720512
    %v937 = vsel %vm936, %v935, %v930
    %v938 = vadd.s32 %v830, 4294967208
    %v939 = vlaneseq
    %v940 = vshrl.u32 %v939, 7
    %v941 = vsub.s32 %v938, %v940
    %v942 = vrot.slane %v768, %v941
    %vm943 = vcmask 786112
    %v944 = vsel %vm943, %v942, %v937
    %v945 = vadd.s32 %v830, 4294967200
    %v946 = vlaneseq
    %v947 = vshrl.u32 %v946, 7
    %v948 = vsub.s32 %v945, %v947
    %v949 = vrot.slane %v771, %v948
    %vm950 = vcmask 851712
    %v951 = vsel %vm950, %v949, %v944
    %v952 = vadd.s32 %v830, 4294967192
    %v953 = vlaneseq
    %v954 = vshrl.u32 %v953, 7
    %v955 = vsub.s32 %v952, %v954
    %v956 = vrot.slane %v774, %v955
    %vm957 = vcmask 917312
    %v958 = vsel %vm957, %v956, %v951
    %v959 = vadd.s32 %v830, 4294967184
    %v960 = vlaneseq
    %v961 = vshrl.u32 %v960, 7
    %v962 = vsub.s32 %v959, %v961
    %v963 = vrot.slane %v777, %v962
    %vm964 = vcmask 982912
    %v965 = vsel %vm964, %v963, %v958
    %v966 = vadd.s32 %v830, 4294967176
    %v967 = vlaneseq
    %v968 = vshrl.u32 %v967, 7
    %v969 = vsub.s32 %v966, %v968
    %v970 = vrot.slane %v780, %v969
    %vm971 = vcmask 1048512
    %v972 = vsel %vm971, %v970, %v965
    %v973 = vlaneseq
    %v974 = vshrl.u32 %v973, 7
    %v975 = vsub.s32 %v830, %v974
    %v976 = vrot.slane %v783, %v975
    %v977 = vlaneseq
    %v978 = vshrl.u32 %v977, 7
    %v979 = vsub.s32 %v868, %v978
    %v980 = vrot.slane %v786, %v979
    %v981 = vsel %vm873, %v980, %v976
    %v982 = vlaneseq
    %v983 = vshrl.u32 %v982, 7
    %v984 = vsub.s32 %v875, %v983
    %v985 = vrot.slane %v789, %v984
    %v986 = vsel %vm880, %v985, %v981
    %v987 = vlaneseq
    %v988 = vshrl.u32 %v987, 7
    %v989 = vsub.s32 %v882, %v988
    %v990 = vrot.slane %v792, %v989
    %v991 = vsel %vm887, %v990, %v986
    %v992 = vlaneseq
    %v993 = vshrl.u32 %v992, 7
    %v994 = vsub.s32 %v889, %v993
    %v995 = vrot.slane %v795, %v994
    %v996 = vsel %vm894, %v995, %v991
    %v997 = vlaneseq
    %v998 = vshrl.u32 %v997, 7
    %v999 = vsub.s32 %v896, %v998
    %v1000 = vrot.slane %v798, %v999
    %v1001 = vsel %vm901, %v1000, %v996
    %v1002 = vlaneseq
    %v1003 = vshrl.u32 %v1002, 7
    %v1004 = vsub.s32 %v903, %v1003
    %v1005 = vrot.slane %v801, %v1004
    %v1006 = vsel %vm908, %v1005, %v1001
    %v1007 = vlaneseq
    %v1008 = vshrl.u32 %v1007, 7
    %v1009 = vsub.s32 %v910, %v1008
    %v1010 = vrot.slane %v804, %v1009
    %v1011 = vsel %vm915, %v1010, %v1006
    %v1012 = vlaneseq
    %v1013 = vshrl.u32 %v1012, 7
    %v1014 = vsub.s32 %v917, %v1013
    %v1015 = vrot.slane %v807, %v1014
    %v1016 = vsel %vm922, %v1015, %v1011
    %v1017 = vlaneseq
    %v1018 = vshrl.u32 %v1017, 7
    %v1019 = vsub.s32 %v924, %v1018
    %v1020 = vrot.slane %v810, %v1019
    %v1021 = vsel %vm929, %v1020, %v1016
    %v1022 = vlaneseq
    %v1023 = vshrl.u32 %v1022, 7
    %v1024 = vsub.s32 %v931, %v1023
    %v1025 = vrot.slane %v813, %v1024
    %v1026 = vsel %vm936, %v1025, %v1021
    %v1027 = vlaneseq
    %v1028 = vshrl.u32 %v1027, 7
    %v1029 = vsub.s32 %v938, %v1028
    %v1030 = vrot.slane %v816, %v1029
    %v1031 = vsel %vm943, %v1030, %v1026
    %v1032 = vlaneseq
    %v1033 = vshrl.u32 %v1032, 7
    %v1034 = vsub.s32 %v945, %v1033
    %v1035 = vrot.slane %v819, %v1034
    %v1036 = vsel %vm950, %v1035, %v1031
    %v1037 = vlaneseq
    %v1038 = vshrl.u32 %v1037, 7
    %v1039 = vsub.s32 %v952, %v1038
    %v1040 = vrot.slane %v822, %v1039
    %v1041 = vsel %vm957, %v1040, %v1036
    %v1042 = vlaneseq
    %v1043 = vshrl.u32 %v1042, 7
    %v1044 = vsub.s32 %v959, %v1043
    %v1045 = vrot.slane %v825, %v1044
    %v1046 = vsel %vm964, %v1045, %v1041
    %v1047 = vlaneseq
    %v1048 = vshrl.u32 %v1047, 7
    %v1049 = vsub.s32 %v966, %v1048
    %v1050 = vrot.slane %v828, %v1049
    %v1051 = vsel %vm971, %v1050, %v1046
    %vm1052 = vcmask 1041409
    %v1053 = vsel %vm1052, %v1051, %v972
    %v1055 = vsel %vm831, %v1053, -1e+30
    %v1056 = vsel %vm272, %v1055, -inf
    %1057 = vmax.xlane.f32.xlu0 %v1056
    %v1058 = vpop.xlane.xlu0 %1057
    %v1059 = vsub.f32 %v1055, %v1058
    %v1060 = vmul.f32 %v1059, 1.442695
    %v1061 = vpow.pop %v1060
    %v1062 = vsel %vm272, %v1061, 0.0
    %1063 = vadd.xlane.f32.xlu0 %v1062
    %v1064 = vpop.xlane.xlu0 %1063
    %v1065 = vrcp.pop %v1064
    %v1066 = vmul.f32 %v1061, %v1065
    %1067 = vst [vmem:[#allocation4] sm:$0x3] %v1066
    %v1068 = vld [vmem:[%s3] sm:$0xf]
    %v1069 = vld [vmem:[%s3 + $0x4] sm:$0xf]
    %v1070 = vld [vmem:[%s3 + $0x8] sm:$0xf]
    %v1071 = vld [vmem:[%s3 + $0xc] sm:$0xf]
    %v1072 = vld [vmem:[%s3 + $0x10] sm:$0xf]
    %v1073 = vld [vmem:[%s3 + $0x14] sm:$0xf]
    %v1074 = vld [vmem:[%s3 + $0x18] sm:$0xf]
    %v1075 = vld [vmem:[%s3 + $0x1c] sm:$0xf]
    %v1076 = vld [vmem:[%s3 + $0x20] sm:$0xf]
    %v1077 = vld [vmem:[%s3 + $0x24] sm:$0xf]
    %v1078 = vld [vmem:[%s3 + $0x28] sm:$0xf]
    %v1079 = vld [vmem:[%s3 + $0x2c] sm:$0xf]
    %v1080 = vld [vmem:[%s3 + $0x30] sm:$0xf]
    %v1081 = vld [vmem:[%s3 + $0x34] sm:$0xf]
    %v1082 = vld [vmem:[%s3 + $0x38] sm:$0xf]
    %v1083 = vld [vmem:[%s3 + $0x3c] sm:$0xf]
    %v1084 = vld [vmem:[%s3 + $0x40] sm:$0xf]
    %v1085 = vld [vmem:[%s3 + $0x44] sm:$0xf]
    %v1086 = vld [vmem:[%s3 + $0x48] sm:$0xf]
    %v1087 = vld [vmem:[%s3 + $0x4c] sm:$0xf]
    %v1088 = vld [vmem:[%s3 + $0x50] sm:$0xf]
    %v1089 = vld [vmem:[%s3 + $0x54] sm:$0xf]
    %v1090 = vld [vmem:[%s3 + $0x58] sm:$0xf]
    %v1091 = vld [vmem:[%s3 + $0x5c] sm:$0xf]
    %v1092 = vld [vmem:[%s3 + $0x60] sm:$0xf]
    %v1093 = vld [vmem:[%s3 + $0x64] sm:$0xf]
    %v1094 = vld [vmem:[%s3 + $0x68] sm:$0xf]
    %v1095 = vld [vmem:[%s3 + $0x6c] sm:$0xf]
    %v1096 = vld [vmem:[%s3 + $0x70] sm:$0xf]
    %v1097 = vld [vmem:[%s3 + $0x74] sm:$0xf]
    %v1098 = vld [vmem:[%s3 + $0x78] sm:$0xf]
    %v1099 = vld [vmem:[%s3 + $0x7c] sm:$0xf]
    %v1100 = vunpack.c.l.bf16 %v1068
    %v1101 = vunpack.c.l.bf16 %v1069
    %v1102 = vunpack.c.l.bf16 %v1070
    %v1103 = vunpack.c.l.bf16 %v1071
    %v1104 = vunpack.c.l.bf16 %v1072
    %v1105 = vunpack.c.l.bf16 %v1073
    %v1106 = vunpack.c.l.bf16 %v1074
    %v1107 = vunpack.c.l.bf16 %v1075
    %v1108 = vunpack.c.l.bf16 %v1076
    %v1109 = vunpack.c.l.bf16 %v1077
    %v1110 = vunpack.c.l.bf16 %v1078
    %v1111 = vunpack.c.l.bf16 %v1079
    %v1112 = vunpack.c.l.bf16 %v1080
    %v1113 = vunpack.c.l.bf16 %v1081
    %v1114 = vunpack.c.l.bf16 %v1082
    %v1115 = vunpack.c.l.bf16 %v1083
    %v1116 = vunpack.c.l.bf16 %v1084
    %v1117 = vunpack.c.l.bf16 %v1085
    %v1118 = vunpack.c.l.bf16 %v1086
    %v1119 = vunpack.c.l.bf16 %v1087
    %v1120 = vunpack.c.l.bf16 %v1088
    %v1121 = vunpack.c.l.bf16 %v1089
    %v1122 = vunpack.c.l.bf16 %v1090
    %v1123 = vunpack.c.l.bf16 %v1091
    %v1124 = vunpack.c.l.bf16 %v1092
    %v1125 = vunpack.c.l.bf16 %v1093
    %v1126 = vunpack.c.l.bf16 %v1094
    %v1127 = vunpack.c.l.bf16 %v1095
    %v1128 = vunpack.c.l.bf16 %v1096
    %v1129 = vunpack.c.l.bf16 %v1097
    %v1130 = vunpack.c.l.bf16 %v1098
    %v1131 = vunpack.c.l.bf16 %v1099
    %v1134 = vunpack.c.l.s4 1966171168
    %v1135 = vunpack.c.0.s8 %v1134
    %v1136 = vlaneseq
    %v1137 = vshrl.u32 %v1136, 7
    %v1138 = vsub.s32 %v1135, %v1137
    %v1139 = vrot.slane %v1066, %v1138
    %v1140 = vcombine.high %v1139, %v1139
    %v1142 = vunpack.c.l.s4 1966171168
    %v1143 = vunpack.c.0.s8 %v1142
    %v1144 = vlaneseq
    %v1145 = vshrl.u32 %v1144, 7
    %v1146 = vsub.s32 %v1143, %v1145
    %v1147 = vrot.slane %v1139, %v1146
    %v1149 = vunpack.c.l.s4 1966171168
    %v1150 = vunpack.c.0.s8 %v1149
    %v1151 = vlaneseq
    %v1152 = vshrl.u32 %v1151, 7
    %v1153 = vsub.s32 %v1150, %v1152
    %v1154 = vrot.slane %v1140, %v1153
    %1157 = vmatprep.subr.mxu0 0.0
    %1158 = vmatpush1.msra.mxu0 %v1100
    %1159 = vmatprep.subr.mxu0 0.0
    %1160 = vmatpush1.msra.mxu0 %v1101
    %1161 = vmatprep.subr.mxu0 0.0
    %1162 = vmatpush1.msra.mxu0 %v1102
    %1163 = vmatprep.subr.mxu0 0.0
    %1164 = vmatpush1.msra.mxu0 %v1103
    %1165 = vmatprep.subr.mxu0 0.0
    %1166 = vmatpush1.msra.mxu0 %v1104
    %1167 = vmatprep.subr.mxu0 0.0
    %1168 = vmatpush1.msra.mxu0 %v1105
    %1169 = vmatprep.subr.mxu0 0.0
    %1170 = vmatpush1.msra.mxu0 %v1106
    %1171 = vmatprep.subr.mxu0 0.0
    %1172 = vmatpush1.msra.mxu0 %v1107
    %1173 = vmatprep.subr.mxu0 0.0
    %1174 = vmatpush1.msra.mxu0 %v1108
    %1175 = vmatprep.subr.mxu0 0.0
    %1176 = vmatpush1.msra.mxu0 %v1109
    %1177 = vmatprep.subr.mxu0 0.0
    %1178 = vmatpush1.msra.mxu0 %v1110
    %1179 = vmatprep.subr.mxu0 0.0
    %1180 = vmatpush1.msra.mxu0 %v1111
    %1181 = vmatprep.subr.mxu0 0.0
    %1182 = vmatpush1.msra.mxu0 %v1112
    %1183 = vmatprep.subr.mxu0 0.0
    %1184 = vmatpush1.msra.mxu0 %v1113
    %1185 = vmatprep.subr.mxu0 0.0
    %1186 = vmatpush1.msra.mxu0 %v1114
    %1187 = vmatprep.subr.mxu0 0.0
    %1188 = vmatpush1.msra.mxu0 %v1115
    %1189 = vmatprep.subr.mxu0 0.0
    %1190 = vmatpush1.msra.mxu0 0.0
    %1191 = vmatprep.subr.mxu0 0.0
    %1192 = vmatpush1.msra.mxu0 0.0
    %1193 = vmatprep.subr.mxu0 0.0
    %1194 = vmatpush1.msra.mxu0 0.0
    %1195 = vmatprep.subr.mxu0 0.0
    %1196 = vmatpush1.msra.mxu0 0.0
    %1197 = vmatprep.subr.mxu0 0.0
    %1198 = vmatpush1.msra.mxu0 0.0
    %1199 = vmatprep.subr.mxu0 0.0
    %1200 = vmatpush1.msra.mxu0 0.0
    %1201 = vmatprep.subr.mxu0 0.0
    %1202 = vmatpush1.msra.mxu0 0.0
    %1203 = vmatprep.subr.mxu0 0.0
    %1204 = vmatpush1.msra.mxu0 0.0
    %1205 = vmatprep.subr.mxu0 0.0
    %1206 = vmatpush1.msra.mxu0 0.0
    %1207 = vmatprep.subr.mxu0 0.0
    %1208 = vmatpush1.msra.mxu0 0.0
    %1209 = vmatprep.subr.mxu0 0.0
    %1210 = vmatpush1.msra.mxu0 0.0
    %1211 = vmatprep.subr.mxu0 0.0
    %1212 = vmatpush1.msra.mxu0 0.0
    %1213 = vmatprep.subr.mxu0 0.0
    %1214 = vmatpush1.msra.mxu0 0.0
    %1215 = vmatprep.subr.mxu0 0.0
    %1216 = vmatpush1.msra.mxu0 0.0
    %1217 = vmatprep.subr.mxu0 0.0
    %1218 = vmatpush1.msra.mxu0 0.0
    %1219 = vmatprep.subr.mxu0 0.0
    %1220 = vmatpush1.msra.mxu0 0.0
    %1221 = vmatprep.mubr.f32.mxu0 0.0
    %1222 = vmatmul.mubr.f32.gmra.mrb[0].mxu0 %v1147
    %v1223 = vpop.f32.mrb[0].mxu0
    %v1224 = vadd.f32 0.0, %v1223
    %v1225 = vpop.f32.mrb[0].mxu0
    %1226 = vdwg.mxu0
    %1227 = vmatprep.subr.mxu0 0.0
    %1228 = vmatpush1.msra.mxu0 %v1116
    %1229 = vmatprep.subr.mxu0 0.0
    %1230 = vmatpush1.msra.mxu0 %v1117
    %1231 = vmatprep.subr.mxu0 0.0
    %1232 = vmatpush1.msra.mxu0 %v1118
    %1233 = vmatprep.subr.mxu0 0.0
    %1234 = vmatpush1.msra.mxu0 %v1119
    %1235 = vmatprep.subr.mxu0 0.0
    %1236 = vmatpush1.msra.mxu0 %v1120
    %1237 = vmatprep.subr.mxu0 0.0
    %1238 = vmatpush1.msra.mxu0 %v1121
    %1239 = vmatprep.subr.mxu0 0.0
    %1240 = vmatpush1.msra.mxu0 %v1122
    %1241 = vmatprep.subr.mxu0 0.0
    %1242 = vmatpush1.msra.mxu0 %v1123
    %1243 = vmatprep.subr.mxu0 0.0
    %1244 = vmatpush1.msra.mxu0 %v1124
    %1245 = vmatprep.subr.mxu0 0.0
    %1246 = vmatpush1.msra.mxu0 %v1125
    %1247 = vmatprep.subr.mxu0 0.0
    %1248 = vmatpush1.msra.mxu0 %v1126
    %1249 = vmatprep.subr.mxu0 0.0
    %1250 = vmatpush1.msra.mxu0 %v1127
    %1251 = vmatprep.subr.mxu0 0.0
    %1252 = vmatpush1.msra.mxu0 %v1128
    %1253 = vmatprep.subr.mxu0 0.0
    %1254 = vmatpush1.msra.mxu0 %v1129
    %1255 = vmatprep.subr.mxu0 0.0
    %1256 = vmatpush1.msra.mxu0 %v1130
    %1257 = vmatprep.subr.mxu0 0.0
    %1258 = vmatpush1.msra.mxu0 %v1131
    %1259 = vmatprep.subr.mxu0 0.0
    %1260 = vmatpush1.msra.mxu0 0.0
    %1261 = vmatprep.subr.mxu0 0.0
    %1262 = vmatpush1.msra.mxu0 0.0
    %1263 = vmatprep.subr.mxu0 0.0
    %1264 = vmatpush1.msra.mxu0 0.0
    %1265 = vmatprep.subr.mxu0 0.0
    %1266 = vmatpush1.msra.mxu0 0.0
    %1267 = vmatprep.subr.mxu0 0.0
    %1268 = vmatpush1.msra.mxu0 0.0
    %1269 = vmatprep.subr.mxu0 0.0
    %1270 = vmatpush1.msra.mxu0 0.0
    %1271 = vmatprep.subr.mxu0 0.0
    %1272 = vmatpush1.msra.mxu0 0.0
    %1273 = vmatprep.subr.mxu0 0.0
    %1274 = vmatpush1.msra.mxu0 0.0
    %1275 = vmatprep.subr.mxu0 0.0
    %1276 = vmatpush1.msra.mxu0 0.0
    %1277 = vmatprep.subr.mxu0 0.0
    %1278 = vmatpush1.msra.mxu0 0.0
    %1279 = vmatprep.subr.mxu0 0.0
    %1280 = vmatpush1.msra.mxu0 0.0
    %1281 = vmatprep.subr.mxu0 0.0
    %1282 = vmatpush1.msra.mxu0 0.0
    %1283 = vmatprep.subr.mxu0 0.0
    %1284 = vmatpush1.msra.mxu0 0.0
    %1285 = vmatprep.subr.mxu0 0.0
    %1286 = vmatpush1.msra.mxu0 0.0
    %1287 = vmatprep.subr.mxu0 0.0
    %1288 = vmatpush1.msra.mxu0 0.0
    %1289 = vmatprep.subr.mxu0 0.0
    %1290 = vmatpush1.msra.mxu0 0.0
    %1291 = vmatprep.mubr.f32.mxu0 0.0
    %1292 = vmatmul.mubr.f32.gmra.mrb[0].mxu0 %v1154
    %v1293 = vpop.f32.mrb[0].mxu0
    %v1294 = vadd.f32 0.0, %v1293
    %v1295 = vpop.f32.mrb[0].mxu0
    %1296 = vdwg.mxu0
    %v1299 = vrot.slane %v1294, 7
    %v1300 = vsel %vm1052, %v1299, %v1224
    %vm1302 = vcmask 386048
    %1303 = vst.msk [vmem:[#allocation2] sm:$0x3] %vm1302, %v1300
    // Predicated region
    $region30: #{tpu_custom_call.1} parent=1 // pred_check
      _
    $region31: #{tpu_custom_call.1} parent=1 // pred_check_branch
      %1305 = sbr.rel (0) target = $region33
    $region32: #{tpu_custom_call.1} parent=1 // pred_region
      %s1307 = ssub.s32 32, 32
      %1308 = vsyncadd [#allocation3], %s1307
      %s1310 = sshll.u32 [#allocation2], 4
      %s1311 = int_to_ptr.vmem [resolvable:$true] %s1310
      %1313 = dma.vmem_to_hbm [thread:$0]  %s1311, 32, %s7, [#allocation3]
    $region33: #{tpu_custom_call.1} parent=1 // pred_fallthru
      _
    // Predicated region
    $region34: #{tpu_custom_call.1} parent=1 // pred_check
      _
    $region35: #{tpu_custom_call.1} parent=1 // pred_check_branch
      %1315 = sbr.rel (0) target = $region37
    $region36: #{tpu_custom_call.1} parent=1 // pred_region
      %s1317 = ssub.s32 32, 32
      %1318 = vsyncadd [#allocation5], %s1317
      %s1320 = sshll.u32 [#allocation4], 4
      %s1321 = int_to_ptr.vmem [resolvable:$true] %s1320
      %1323 = dma.vmem_to_hbm [thread:$0]  %s1321, 32, %s8, [#allocation5]
    $region37: #{tpu_custom_call.1} parent=1 // pred_fallthru
      _
    // Predicated region
    $region38: #{tpu_custom_call.1} parent=1 // pred_check
      _
    $region39: #{tpu_custom_call.1} parent=1 // pred_check_branch
      %1325 = sbr.rel (0) target = $region41
    $region40: #{tpu_custom_call.1} parent=1 // pred_region
      %1326 = dma.done [#allocation3], 32
    $region41: #{tpu_custom_call.1} parent=1 // pred_fallthru
      _
    // Predicated region
    $region42: #{tpu_custom_call.1} parent=1 // pred_check
      _
    $region43: #{tpu_custom_call.1} parent=1 // pred_check_branch
      %1328 = sbr.rel (0) target = $region45
    $region44: #{tpu_custom_call.1} parent=1 // pred_region
      %1329 = dma.done [#allocation5], 32
    $region45: #{tpu_custom_call.1} parent=1 // pred_fallthru
      _
    %1330 = vsyncpa [#allocation3], 1
    %1331 = vsyncpa [#allocation5], 1

</llo_original>
